<compile_context>
chip_gen: v7x
topology: tpu7x:2x2x1
jax: 0.10.0
libtpu: 0.0.40
codegen_flags: <defaults>
</compile_context>

<pallas_src>
import functools

import jax
import jax.numpy as jnp
from jax.experimental import pallas as pl
from jax.experimental.pallas import tpu as pltpu


def _tcl_kernel(x_ref, c_ref, tcol_ref, tfull_ref,     # inputs
                loss_ref, prec_ref,                     # outputs (per-block partial sums)
                *, batch, margin, mxu_bf16):
    i = pl.program_id(0)
    tI = x_ref.shape[0]
    C, D = c_ref.shape

    x = x_ref[...]                         # (tI, D) f32   row block of inputs
    cen = c_ref[...]                       # (C, D)  f32   all class centers (resident)
    t_col = tcol_ref[...]                  # (tI, 1) int32 targets of this row block
    t_all = tfull_ref[...]                 # (B, 1)  int32 full targets (resident)

    mxu_dt = jnp.bfloat16 if mxu_bf16 else jnp.float32

    # Cross term <x[i], centers[c]> for all classes: (tI,D) x (C,D)^T -> (tI,C).
    g = jax.lax.dot_general(x.astype(mxu_dt), cen.astype(mxu_dt),
                            (((1,), (1,)), ((), ())),
                            preferred_element_type=jnp.float32)      # (tI, C)

    # Squared norms; center-norm row produced directly lane-oriented (1, C)
    # on the MXU — no cross-lane transpose.
    x_sq = jnp.sum(x * x, axis=1, keepdims=True)                     # (tI, 1)
    ones_row = jnp.ones((1, D), jnp.float32)
    c_sq = jax.lax.dot_general(ones_row, cen * cen,
                               (((1,), (1,)), ((), ())),
                               preferred_element_type=jnp.float32)   # (1, C)

    d2 = x_sq + c_sq - 2.0 * g                                       # (tI, C)

    # Same-class one-hot selector and "class present in batch" mask, built
    # in-kernel (no HBM mask traffic).
    cls_row = jax.lax.broadcasted_iota(jnp.int32, (1, C), 1)         # (1, C)
    sel_ap = t_col == cls_row                                        # (tI, C)
    present = jnp.max((t_all == cls_row).astype(jnp.int32),
                      axis=0, keepdims=True) > 0                     # (1, C)

    neg_inf = jnp.float32(-jnp.inf)
    pos_inf = jnp.float32(jnp.inf)
    d_ap2 = jnp.max(jnp.where(sel_ap, d2, neg_inf),
                    axis=1, keepdims=True)                           # (tI, 1)
    d_an2 = jnp.min(jnp.where(jnp.logical_and(jnp.logical_not(sel_ap), present),
                              d2, pos_inf),
                    axis=1, keepdims=True)                           # (tI, 1)

    # sqrt only on the reduced vectors: sqrt(clamp(.)) is monotone, so
    # max/min on d2 select the same elements as on d.
    dist_ap = jnp.sqrt(jnp.maximum(d_ap2, 1e-12))
    dist_an = jnp.sqrt(jnp.maximum(d_an2, 1e-12))

    row_ids = i * tI + jax.lax.broadcasted_iota(jnp.int32, (tI, 1), 0)
    row_valid = row_ids < batch                                      # mask padded rows

    hinge = jnp.maximum(dist_ap - dist_an + margin, 0.0)
    diff = dist_an - dist_ap
    loss_ref[0, 0] = jnp.sum(jnp.where(row_valid, hinge, 0.0))
    prec_ref[0, 0] = jnp.sum(jnp.where(row_valid, diff, 0.0))


def triplet_center_loss(inputs, targets, centers, margin=0.0, l2norm=False,
                        mxu_bf16=True, block_rows=None):
    """Pallas implementation of TripletCenterLoss.forward (l2norm=False path)."""
    if l2norm:
        # TODO(synk): l2norm branch (F.normalize over the stacked batch axis) not implemented.
        raise NotImplementedError("l2norm=True path not implemented")

    B, D = inputs.shape
    C = centers.shape[0]

    # Row tile: whole batch if small, otherwise 512 rows per block (multiple
    # of 8 sublanes; VMEM per block ~ tI*(D + C) f32 — comfortably small).
    if block_rows is None:
        block_rows = B if B <= 512 else 512
    if block_rows != B:
        assert block_rows % 8 == 0, "row tile must be a multiple of 8"
    n_i = pl.cdiv(B, block_rows)

    x = inputs.astype(jnp.float32)
    cen = centers.astype(jnp.float32)
    t_col = targets.astype(jnp.int32).reshape(B, 1)

    kernel = functools.partial(_tcl_kernel, batch=B, margin=float(margin),
                               mxu_bf16=bool(mxu_bf16))

    cost = pl.CostEstimate(
        flops=int(2 * B * C * D + 2 * B * D + 2 * C * D + 8 * B * C),
        transcendentals=int(2 * B),
        bytes_accessed=int(4 * (B * D + n_i * C * D + 2 * B + 2 * n_i)),
    )

    loss_parts, prec_parts = pl.pallas_call(
        kernel,
        out_shape=(
            jax.ShapeDtypeStruct((n_i, 1), jnp.float32),
            jax.ShapeDtypeStruct((n_i, 1), jnp.float32),
        ),
        grid_spec=pltpu.PrefetchScalarGridSpec(
            num_scalar_prefetch=0,
            grid=(n_i,),
            in_specs=[
                pl.BlockSpec((block_rows, D), lambda i: (i, 0)),   # x row block
                pl.BlockSpec((C, D), lambda i: (0, 0)),            # centers (resident)
                pl.BlockSpec((block_rows, 1), lambda i: (i, 0)),   # targets of row block
                pl.BlockSpec((B, 1), lambda i: (0, 0)),            # full targets (resident)
            ],
            out_specs=(
                pl.BlockSpec((1, 1), lambda i: (i, 0),
                             memory_space=pltpu.MemorySpace.SMEM),
                pl.BlockSpec((1, 1), lambda i: (i, 0),
                             memory_space=pltpu.MemorySpace.SMEM),
            ),
        ),
        compiler_params=pltpu.CompilerParams(
            dimension_semantics=("parallel",)),
        cost_estimate=cost,
    )(x, cen, t_col, t_col)

    loss = jnp.sum(loss_parts) / B        # MarginRankingLoss mean over batch
    prec = jnp.sum(prec_parts) / B        # sum(dist_an - dist_ap) / batch
    return loss, prec


def _reference(inputs, targets, centers, margin=0.0):
    """Pure-JAX reference matching the PyTorch forward."""
    B = inputs.shape[0]
    cb = centers[targets]                                     # (B, D)
    diff = cb[None, :, :] - inputs[:, None, :]                # (B, B, D)
    dist = jnp.sqrt(jnp.maximum(jnp.sum(diff ** 2, axis=2), 1e-12))
    mask = targets[:, None] == targets[None, :]
    dist_ap = jnp.max(jnp.where(mask, dist, -jnp.inf), axis=1)
    dist_an = jnp.min(jnp.where(mask, jnp.inf, dist), axis=1)
    loss = jnp.mean(jnp.maximum(dist_ap - dist_an + margin, 0.0))
    prec = jnp.sum(dist_an - dist_ap) / B
    return loss, prec


if __name__ == "__main__":
    key = jax.random.PRNGKey(0)
    k_c, k_x, k_c2, k_x2 = jax.random.split(key, 4)

    # --- small demo shapes (matches module usage: batch=8, embed=32, 10 classes)
    num_classes, center_embed, batch, margin = 10, 32, 8, 0.0
    centers = jax.random.normal(k_c, (num_classes, center_embed), dtype=jnp.float32)
    inputs = jax.random.normal(k_x, (batch, center_embed), dtype=jnp.float32)
    targets = jnp.array([0, 1, 2, 3, 0, 1, 2, 3], dtype=jnp.int32)

    ref_loss, ref_prec = _reference(inputs, targets, centers, margin=margin)

    # exact path (f32 MXU) — tight tolerance
    loss, prec = triplet_center_loss(inputs, targets, centers, margin=margin,
                                     mxu_bf16=False)
    loss = jax.block_until_ready(loss)
    prec = jax.block_until_ready(prec)
    assert jnp.allclose(loss, ref_loss, rtol=1e-5, atol=1e-5), (loss, ref_loss)
    assert jnp.allclose(prec, ref_prec, rtol=1e-5, atol=1e-5), (prec, ref_prec)

    # fast path (bf16 MXU cross term) — loose tolerance
    loss_bf, prec_bf = triplet_center_loss(inputs, targets, centers, margin=margin,
                                           mxu_bf16=True)
    loss_bf = jax.block_until_ready(loss_bf)
    prec_bf = jax.block_until_ready(prec_bf)
    assert jnp.allclose(loss_bf, ref_loss, rtol=5e-2, atol=5e-2), (loss_bf, ref_loss)
    assert jnp.allclose(prec_bf, ref_prec, rtol=5e-2, atol=5e-2), (prec_bf, ref_prec)

    # --- tiled path: multi-block grid, B not a multiple of the tile, nonzero margin
    B2, D2, C2, margin2 = 200, 96, 13, 0.3
    centers2 = jax.random.normal(k_c2, (C2, D2), dtype=jnp.float32)
    inputs2 = jax.random.normal(k_x2, (B2, D2), dtype=jnp.float32)
    targets2 = jnp.arange(B2, dtype=jnp.int32) % C2

    ref_loss2, ref_prec2 = _reference(inputs2, targets2, centers2, margin=margin2)
    loss2, prec2 = triplet_center_loss(inputs2, targets2, centers2, margin=margin2,
                                       mxu_bf16=False, block_rows=64)
    loss2 = jax.block_until_ready(loss2)
    prec2 = jax.block_until_ready(prec2)
    assert jnp.allclose(loss2, ref_loss2, rtol=1e-4, atol=1e-4), (loss2, ref_loss2)
    assert jnp.allclose(prec2, ref_prec2, rtol=1e-4, atol=1e-4), (prec2, ref_prec2)

    print("KERNEL_OK")
</pallas_src>

<mosaic_0001>
module attributes {stable_mosaic.version = 11 : i64} {
  func.func @_tcl_kernel(%arg0: i32, %arg1: memref<8x32xf32, #tpu.memory_space<vmem>>, %arg2: memref<10x32xf32, #tpu.memory_space<vmem>>, %arg3: memref<8x1xi32, #tpu.memory_space<vmem>>, %arg4: memref<8x1xi32, #tpu.memory_space<vmem>>, %arg5: memref<1x1xf32, #tpu.memory_space<smem>>, %arg6: memref<1x1xf32, #tpu.memory_space<smem>>) attributes {dimension_semantics = [#tpu.dimension_semantics<parallel>], iteration_bounds = array<i64: 1>, scalar_prefetch = 0 : i64, scratch_operands = 0 : i64, tpu.core_type = #tpu.core_type<tc>, window_params = [{transform_indices = @transform_0, window_bounds = array<i64: 8, 32>}, {pipeline_mode = #tpu.pipeline_mode<synchronous>, transform_indices = @transform_1, window_bounds = array<i64: 10, 32>}, {transform_indices = @transform_2, window_bounds = array<i64: 8, 1>}, {pipeline_mode = #tpu.pipeline_mode<synchronous>, transform_indices = @transform_3, window_bounds = array<i64: 8, 1>}, {transform_indices = @transform_4, window_bounds = array<i64: 1, 1>}, {transform_indices = @transform_5, window_bounds = array<i64: 1, 1>}]} {
    %c0 = arith.constant 0 : index
    %c0_0 = arith.constant 0 : index
    %0 = vector.load %arg1[%c0, %c0_0] : memref<8x32xf32, #tpu.memory_space<vmem>>, vector<8x32xf32>
    %c0_1 = arith.constant 0 : index
    %c0_2 = arith.constant 0 : index
    %1 = vector.load %arg2[%c0_1, %c0_2] : memref<10x32xf32, #tpu.memory_space<vmem>>, vector<10x32xf32>
    %c0_3 = arith.constant 0 : index
    %c0_4 = arith.constant 0 : index
    %2 = vector.load %arg3[%c0_3, %c0_4] : memref<8x1xi32, #tpu.memory_space<vmem>>, vector<8x1xi32>
    %c0_5 = arith.constant 0 : index
    %c0_6 = arith.constant 0 : index
    %3 = vector.load %arg4[%c0_5, %c0_6] : memref<8x1xi32, #tpu.memory_space<vmem>>, vector<8x1xi32>
    %cst = arith.constant dense<0.000000e+00> : vector<8x10xf32>
    %4 = tpu.matmul %0, %1, %cst {dimension_numbers = #tpu.dot_dimension_numbers<[1], [1], [0], [0], [0, 0, 1, 0], [], []>} : vector<8x32xf32>, vector<10x32xf32>, vector<8x10xf32> -> vector<8x10xf32>
    %5 = arith.mulf %0, %0 : vector<8x32xf32>
    %cst_7 = arith.constant dense<0.000000e+00> : vector<8xf32>
    %6 = vector.multi_reduction <add>, %5, %cst_7 [1] : vector<8x32xf32> to vector<8xf32>
    %7 = vector.shape_cast %6 : vector<8xf32> to vector<8x1xf32>
    %cst_8 = arith.constant 1.000000e+00 : f32
    %8 = vector.broadcast %cst_8 : f32 to vector<1x32xf32>
    %9 = arith.mulf %1, %1 : vector<10x32xf32>
    %cst_9 = arith.constant dense<0.000000e+00> : vector<1x10xf32>
    %10 = tpu.matmul %8, %9, %cst_9 {dimension_numbers = #tpu.dot_dimension_numbers<[1], [1], [0], [0], [0, 0, 1, 0], [], []>} : vector<1x32xf32>, vector<10x32xf32>, vector<1x10xf32> -> vector<1x10xf32>
    %11 = vector.broadcast %7 : vector<8x1xf32> to vector<8x10xf32>
    %12 = vector.broadcast %10 : vector<1x10xf32> to vector<8x10xf32>
    %13 = arith.addf %11, %12 : vector<8x10xf32>
    %cst_10 = arith.constant 2.000000e+00 : f32
    %14 = vector.broadcast %cst_10 : f32 to vector<8x10xf32>
    %15 = arith.mulf %14, %4 : vector<8x10xf32>
    %16 = arith.subf %13, %15 : vector<8x10xf32>
    %17 = tpu.iota {dimensions = array<i32: 1>} : vector<1x10xi32>
    %18 = vector.broadcast %2 : vector<8x1xi32> to vector<8x10xi32>
    %19 = vector.broadcast %17 : vector<1x10xi32> to vector<8x10xi32>
    %20 = arith.cmpi eq, %18, %19 : vector<8x10xi32>
    %21 = vector.broadcast %3 : vector<8x1xi32> to vector<8x10xi32>
    %22 = vector.broadcast %17 : vector<1x10xi32> to vector<8x10xi32>
    %23 = arith.cmpi eq, %21, %22 : vector<8x10xi32>
    %24 = arith.extui %23 : vector<8x10xi1> to vector<8x10xi32>
    %cst_11 = arith.constant dense<-2147483648> : vector<10xi32>
    %25 = vector.multi_reduction <maxsi>, %24, %cst_11 [0] : vector<8x10xi32> to vector<10xi32>
    %26 = vector.shape_cast %25 : vector<10xi32> to vector<1x10xi32>
    %c0_i32 = arith.constant 0 : i32
    %27 = vector.broadcast %c0_i32 : i32 to vector<1x10xi32>
    %28 = arith.cmpi sgt, %26, %27 : vector<1x10xi32>
    %cst_12 = arith.constant 0xFF800000 : f32
    %29 = vector.broadcast %cst_12 : f32 to vector<8x10xf32>
    %30 = arith.select %20, %16, %29 : vector<8x10xi1>, vector<8x10xf32>
    %cst_13 = arith.constant dense<0xFF800000> : vector<8xf32>
    %31 = vector.multi_reduction <maximumf>, %30, %cst_13 [1] : vector<8x10xf32> to vector<8xf32>
    %32 = vector.shape_cast %31 : vector<8xf32> to vector<8x1xf32>
    %cst_14 = arith.constant dense<true> : vector<8x10xi1>
    %33 = arith.xori %20, %cst_14 : vector<8x10xi1>
    %34 = vector.broadcast %28 : vector<1x10xi1> to vector<8x10xi1>
    %35 = arith.andi %33, %34 : vector<8x10xi1>
    %cst_15 = arith.constant 0x7F800000 : f32
    %36 = vector.broadcast %cst_15 : f32 to vector<8x10xf32>
    %37 = arith.select %35, %16, %36 : vector<8x10xi1>, vector<8x10xf32>
    %cst_16 = arith.constant dense<0x7F800000> : vector<8xf32>
    %38 = vector.multi_reduction <minimumf>, %37, %cst_16 [1] : vector<8x10xf32> to vector<8xf32>
    %39 = vector.shape_cast %38 : vector<8xf32> to vector<8x1xf32>
    %cst_17 = arith.constant 9.99999996E-13 : f32
    %40 = vector.broadcast %cst_17 : f32 to vector<8x1xf32>
    %41 = arith.maximumf %32, %40 : vector<8x1xf32>
    %42 = math.sqrt %41 : vector<8x1xf32>
    %cst_18 = arith.constant 9.99999996E-13 : f32
    %43 = vector.broadcast %cst_18 : f32 to vector<8x1xf32>
    %44 = arith.maximumf %39, %43 : vector<8x1xf32>
    %45 = math.sqrt %44 : vector<8x1xf32>
    %c8_i32 = arith.constant 8 : i32
    %46 = arith.muli %arg0, %c8_i32 : i32
    %47 = tpu.iota {dimensions = array<i32: 0>} : vector<8x1xi32>
    %48 = vector.broadcast %46 : i32 to vector<8x1xi32>
    %49 = arith.addi %48, %47 : vector<8x1xi32>
    %c8_i32_19 = arith.constant 8 : i32
    %50 = vector.broadcast %c8_i32_19 : i32 to vector<8x1xi32>
    %51 = arith.cmpi slt, %49, %50 : vector<8x1xi32>
    %52 = arith.subf %42, %45 : vector<8x1xf32>
    %cst_20 = arith.constant 0.000000e+00 : f32
    %53 = vector.broadcast %cst_20 : f32 to vector<8x1xf32>
    %54 = arith.addf %52, %53 : vector<8x1xf32>
    %cst_21 = arith.constant 0.000000e+00 : f32
    %55 = vector.broadcast %cst_21 : f32 to vector<8x1xf32>
    %56 = arith.maximumf %54, %55 : vector<8x1xf32>
    %57 = arith.subf %45, %42 : vector<8x1xf32>
    %cst_22 = arith.constant 0.000000e+00 : f32
    %58 = vector.broadcast %cst_22 : f32 to vector<8x1xf32>
    %59 = arith.select %51, %56, %58 : vector<8x1xi1>, vector<8x1xf32>
    %60 = vector.shape_cast %59 : vector<8x1xf32> to vector<1x8x1xf32>
    %cst_23 = arith.constant dense<0.000000e+00> : vector<1xf32>
    %61 = vector.multi_reduction <add>, %60, %cst_23 [1, 2] : vector<1x8x1xf32> to vector<1xf32>
    %62 = vector.shape_cast %61 : vector<1xf32> to vector<1x1x1xf32>
    %63 = vector.extract %62[0, 0, 0] : f32 from vector<1x1x1xf32>
    %c0_24 = arith.constant 0 : index
    %c0_25 = arith.constant 0 : index
    %64 = memref.load %arg5[%c0_24, %c0_25] : memref<1x1xf32, #tpu.memory_space<smem>>
    memref.store %63, %arg5[%c0_24, %c0_25] : memref<1x1xf32, #tpu.memory_space<smem>>
    %cst_26 = arith.constant 0.000000e+00 : f32
    %65 = vector.broadcast %cst_26 : f32 to vector<8x1xf32>
    %66 = arith.select %51, %57, %65 : vector<8x1xi1>, vector<8x1xf32>
    %67 = vector.shape_cast %66 : vector<8x1xf32> to vector<1x8x1xf32>
    %cst_27 = arith.constant dense<0.000000e+00> : vector<1xf32>
    %68 = vector.multi_reduction <add>, %67, %cst_27 [1, 2] : vector<1x8x1xf32> to vector<1xf32>
    %69 = vector.shape_cast %68 : vector<1xf32> to vector<1x1x1xf32>
    %70 = vector.extract %69[0, 0, 0] : f32 from vector<1x1x1xf32>
    %c0_28 = arith.constant 0 : index
    %c0_29 = arith.constant 0 : index
    %71 = memref.load %arg6[%c0_28, %c0_29] : memref<1x1xf32, #tpu.memory_space<smem>>
    memref.store %70, %arg6[%c0_28, %c0_29] : memref<1x1xf32, #tpu.memory_space<smem>>
    return
  }
  func.func @transform_0(%arg0: i32) -> (i32, i32) {
    %c0_i32 = arith.constant 0 : i32
    %c0_i32_0 = arith.constant 0 : i32
    return %arg0, %c0_i32 : i32, i32
  }
  func.func @transform_1(%arg0: i32) -> (i32, i32) {
    %c0_i32 = arith.constant 0 : i32
    %c0_i32_0 = arith.constant 0 : i32
    %c0_i32_1 = arith.constant 0 : i32
    return %c0_i32, %c0_i32_0 : i32, i32
  }
  func.func @transform_2(%arg0: i32) -> (i32, i32) {
    %c0_i32 = arith.constant 0 : i32
    %c0_i32_0 = arith.constant 0 : i32
    return %arg0, %c0_i32 : i32, i32
  }
  func.func @transform_3(%arg0: i32) -> (i32, i32) {
    %c0_i32 = arith.constant 0 : i32
    %c0_i32_0 = arith.constant 0 : i32
    %c0_i32_1 = arith.constant 0 : i32
    return %c0_i32, %c0_i32_0 : i32, i32
  }
  func.func @transform_4(%arg0: i32) -> (i32, i32) {
    %c0_i32 = arith.constant 0 : i32
    %c0_i32_0 = arith.constant 0 : i32
    return %arg0, %c0_i32 : i32, i32
  }
  func.func @transform_5(%arg0: i32) -> (i32, i32) {
    %c0_i32 = arith.constant 0 : i32
    %c0_i32_0 = arith.constant 0 : i32
    return %arg0, %c0_i32 : i32, i32
  }
}

</mosaic_0001>

<llo_original>
// kernel: tpu_custom_call.1
$region0: #{tpu_custom_call.1}
  #allocation0 [shape = 'u32[]', space=smem, size = 0x4, offset = 0x4, fixed_abs, tag = 'smem constant byte address 0x4 - core index']
  #allocation1 [shape = 'u32[144,128]{1,0:T(1,128)}', space=vmem, size = 0x12000, scoped, tag = 'internal scratch']
  %s0 = inlined_call_operand.hbm [shape: f32[8,32], index: 0, kind: input, shape index: {}]
  %s1 = inlined_call_operand.vmem [shape: f32[10,32], index: 1, kind: input, shape index: {}]
  %s2 = inlined_call_operand.vmem [shape: s32[8,1], index: 2, kind: input, shape index: {}]
  %s3 = inlined_call_operand.vmem [shape: s32[8,1], index: 3, kind: input, shape index: {}]
  %s4 = inlined_call_operand.hbm [shape: f32[1,1], index: 4, kind: output, shape index: {0}]
  %s5 = inlined_call_operand.hbm [shape: f32[1,1], index: 5, kind: output, shape index: {1}]
  %6 = xla_tuple %s4, %s5
  %s7 = sld [smem:[#allocation0]]
  $region38: #{tpu_custom_call.1} parent=0
    _
  %s9 = ssub.s32 1, %s7
  %s10 = scalar_select 0, %s9, %s7
  $region1: #{tpu_custom_call.1} parent=0
    #allocation2 [shape = 'u8[4096]{0}', space=vmem, size = 0x1000, scoped, tag = 'input window, operand 0, single buffered']
    #allocation3 [shape = 's32[1]{0}', space=sflag, size = 0x4, scoped, tag = 'scoped memory for tpu_custom_call.1']
    #allocation4 [shape = 's32[1]{0}', space=sflag, size = 0x4, scoped, tag = 'scoped memory for tpu_custom_call.1']
    #allocation5 [shape = 'u8[512]{0}', space=smem, size = 0x200, scoped, tag = 'output window, operand 0, single buffered']
    #allocation6 [shape = 'u8[512]{0}', space=smem, size = 0x200, scoped, tag = 'output window, operand 1, single buffered']
    #allocation7 [shape = 's32[1]{0}', space=sflag, size = 0x4, scoped, tag = 'scoped memory for tpu_custom_call.1']
    %11 = vsyncpa [#allocation3], 0
    %12 = vsyncpa [#allocation4], 0
    %13 = vsyncpa [#allocation7], 0
    // Predicated region
    $region2: #{tpu_custom_call.1} parent=1 // pred_check
      _
    $region3: #{tpu_custom_call.1} parent=1 // pred_check_branch
      %15 = sbr.rel (0) target = $region5
    $region4: #{tpu_custom_call.1} parent=1 // pred_region
      %s17 = ssub.s32 128, 128
      %18 = vsyncadd [#allocation3], %s17
      %s20 = sshll.u32 [#allocation2], 4
      %s21 = int_to_ptr.vmem [resolvable:$true] %s20
      %23 = dma.hbm_to_vmem [thread:$0]  %s0, 128, %s21, [#allocation3]
    $region5: #{tpu_custom_call.1} parent=1 // pred_fallthru
      _
    // Predicated region
    $region6: #{tpu_custom_call.1} parent=1 // pred_check
      _
    $region7: #{tpu_custom_call.1} parent=1 // pred_check_branch
      %25 = sbr.rel (0) target = $region9
    $region8: #{tpu_custom_call.1} parent=1 // pred_region
      _
    $region9: #{tpu_custom_call.1} parent=1 // pred_fallthru
      _
    // Predicated region
    $region10: #{tpu_custom_call.1} parent=1 // pred_check
      _
    $region11: #{tpu_custom_call.1} parent=1 // pred_check_branch
      %27 = sbr.rel (0) target = $region13
    $region12: #{tpu_custom_call.1} parent=1 // pred_region
      _
    $region13: #{tpu_custom_call.1} parent=1 // pred_fallthru
      _
    // Predicated region
    $region14: #{tpu_custom_call.1} parent=1 // pred_check
      _
    $region15: #{tpu_custom_call.1} parent=1 // pred_check_branch
      %29 = sbr.rel (0) target = $region17
    $region16: #{tpu_custom_call.1} parent=1 // pred_region
      _
    $region17: #{tpu_custom_call.1} parent=1 // pred_fallthru
      _
    // Predicated region
    $region18: #{tpu_custom_call.1} parent=1 // pred_check
      _
    $region19: #{tpu_custom_call.1} parent=1 // pred_check_branch
      %31 = sbr.rel (0) target = $region21
    $region20: #{tpu_custom_call.1} parent=1 // pred_region
      %32 = dma.done [#allocation3], 128
    $region21: #{tpu_custom_call.1} parent=1 // pred_fallthru
      _
    %v33 = vld [vmem:[#allocation2] sm:$0xff]
    %v34 = vld [vmem:[%s1] sm:$0xff]
    %v35 = vld [vmem:[%s1 + $0x8] sm:$0x3]
    %v36 = vld [vmem:[%s2] sm:$0xff]
    %v37 = vld [vmem:[%s3] sm:$0xff]
    %vm38 = vcmask 261120
    %v40 = vsel %vm38, %v33, 0
    %v43 = vsel %vm38, %v34, 0
    %v46 = vsel %vm38, %v35, 0
    %48 = vmatprep.subr.mxu0 0.0
    %49 = vmatpush1.xpose.msra.mxu0 %v43
    %50 = vmatprep.subr.mxu0 0.0
    %51 = vmatpush1.xpose.msra.mxu0 %v46
    %52 = vmatprep.subr.mxu0 0.0
    %53 = vmatpush1.xpose.msra.mxu0 0.0
    %54 = vmatprep.subr.mxu0 0.0
    %55 = vmatpush1.xpose.msra.mxu0 0.0
    %56 = vmatprep.subr.mxu0 0.0
    %57 = vmatpush1.xpose.msra.mxu0 0.0
    %58 = vmatprep.subr.mxu0 0.0
    %59 = vmatpush1.xpose.msra.mxu0 0.0
    %60 = vmatprep.subr.mxu0 0.0
    %61 = vmatpush1.xpose.msra.mxu0 0.0
    %62 = vmatprep.subr.mxu0 0.0
    %63 = vmatpush1.xpose.msra.mxu0 0.0
    %64 = vmatprep.subr.mxu0 0.0
    %65 = vmatpush1.xpose.msra.mxu0 0.0
    %66 = vmatprep.subr.mxu0 0.0
    %67 = vmatpush1.xpose.msra.mxu0 0.0
    %68 = vmatprep.subr.mxu0 0.0
    %69 = vmatpush1.xpose.msra.mxu0 0.0
    %70 = vmatprep.subr.mxu0 0.0
    %71 = vmatpush1.xpose.msra.mxu0 0.0
    %72 = vmatprep.subr.mxu0 0.0
    %73 = vmatpush1.xpose.msra.mxu0 0.0
    %74 = vmatprep.subr.mxu0 0.0
    %75 = vmatpush1.xpose.msra.mxu0 0.0
    %76 = vmatprep.subr.mxu0 0.0
    %77 = vmatpush1.xpose.msra.mxu0 0.0
    %78 = vmatprep.subr.mxu0 0.0
    %79 = vmatpush1.xpose.msra.mxu0 0.0
    %80 = vmatprep.subr.mxu0 0.0
    %81 = vmatpush1.xpose.msra.mxu0 0.0
    %82 = vmatprep.subr.mxu0 0.0
    %83 = vmatpush1.xpose.msra.mxu0 0.0
    %84 = vmatprep.subr.mxu0 0.0
    %85 = vmatpush1.xpose.msra.mxu0 0.0
    %86 = vmatprep.subr.mxu0 0.0
    %87 = vmatpush1.xpose.msra.mxu0 0.0
    %88 = vmatprep.subr.mxu0 0.0
    %89 = vmatpush1.xpose.msra.mxu0 0.0
    %90 = vmatprep.subr.mxu0 0.0
    %91 = vmatpush1.xpose.msra.mxu0 0.0
    %92 = vmatprep.subr.mxu0 0.0
    %93 = vmatpush1.xpose.msra.mxu0 0.0
    %94 = vmatprep.subr.mxu0 0.0
    %95 = vmatpush1.xpose.msra.mxu0 0.0
    %96 = vmatprep.subr.mxu0 0.0
    %97 = vmatpush1.xpose.msra.mxu0 0.0
    %98 = vmatprep.subr.mxu0 0.0
    %99 = vmatpush1.xpose.msra.mxu0 0.0
    %100 = vmatprep.subr.mxu0 0.0
    %101 = vmatpush1.xpose.msra.mxu0 0.0
    %102 = vmatprep.subr.mxu0 0.0
    %103 = vmatpush1.xpose.msra.mxu0 0.0
    %104 = vmatprep.subr.mxu0 0.0
    %105 = vmatpush1.xpose.msra.mxu0 0.0
    %106 = vmatprep.subr.mxu0 0.0
    %107 = vmatpush1.xpose.msra.mxu0 0.0
    %108 = vmatprep.subr.mxu0 0.0
    %109 = vmatpush1.xpose.msra.mxu0 0.0
    %110 = vmatprep.subr.mxu0 0.0
    %111 = vmatpush1.xpose.msra.mxu0 0.0
    %112 = vmatprep.mubr.f32.mxu0 0.0
    %113 = vmatmul.mubr.f32.gmra.mrb[0].mxu0 %v40
    %v114 = vpop.f32.mrb[0].mxu0
    %v115 = vadd.f32 0.0, %v114
    %v116 = vpop.f32.mrb[0].mxu0
    %117 = vdwg.mxu0
    %v118 = vmul.f32 %v33, %v33
    %v119 = vsel %vm38, %v118, 0.0
    %120 = vadd.xlane.f32.xlu0 %v119
    %v121 = vpop.xlane.xlu0 %120
    %v122 = vmul.f32 %v34, %v34
    %v123 = vmul.f32 %v35, %v35
    %v125 = vsel %vm38, 1.0, 0
    %v128 = vsel %vm38, %v122, 0
    %v131 = vsel %vm38, %v123, 0
    %133 = vmatprep.subr.mxu0 0.0
    %134 = vmatpush1.xpose.msra.mxu0 %v128
    %135 = vmatprep.subr.mxu0 0.0
    %136 = vmatpush1.xpose.msra.mxu0 %v131
    %137 = vmatprep.subr.mxu0 0.0
    %138 = vmatpush1.xpose.msra.mxu0 0.0
    %139 = vmatprep.subr.mxu0 0.0
    %140 = vmatpush1.xpose.msra.mxu0 0.0
    %141 = vmatprep.subr.mxu0 0.0
    %142 = vmatpush1.xpose.msra.mxu0 0.0
    %143 = vmatprep.subr.mxu0 0.0
    %144 = vmatpush1.xpose.msra.mxu0 0.0
    %145 = vmatprep.subr.mxu0 0.0
    %146 = vmatpush1.xpose.msra.mxu0 0.0
    %147 = vmatprep.subr.mxu0 0.0
    %148 = vmatpush1.xpose.msra.mxu0 0.0
    %149 = vmatprep.subr.mxu0 0.0
    %150 = vmatpush1.xpose.msra.mxu0 0.0
    %151 = vmatprep.subr.mxu0 0.0
    %152 = vmatpush1.xpose.msra.mxu0 0.0
    %153 = vmatprep.subr.mxu0 0.0
    %154 = vmatpush1.xpose.msra.mxu0 0.0
    %155 = vmatprep.subr.mxu0 0.0
    %156 = vmatpush1.xpose.msra.mxu0 0.0
    %157 = vmatprep.subr.mxu0 0.0
    %158 = vmatpush1.xpose.msra.mxu0 0.0
    %159 = vmatprep.subr.mxu0 0.0
    %160 = vmatpush1.xpose.msra.mxu0 0.0
    %161 = vmatprep.subr.mxu0 0.0
    %162 = vmatpush1.xpose.msra.mxu0 0.0
    %163 = vmatprep.subr.mxu0 0.0
    %164 = vmatpush1.xpose.msra.mxu0 0.0
    %165 = vmatprep.subr.mxu0 0.0
    %166 = vmatpush1.xpose.msra.mxu0 0.0
    %167 = vmatprep.subr.mxu0 0.0
    %168 = vmatpush1.xpose.msra.mxu0 0.0
    %169 = vmatprep.subr.mxu0 0.0
    %170 = vmatpush1.xpose.msra.mxu0 0.0
    %171 = vmatprep.subr.mxu0 0.0
    %172 = vmatpush1.xpose.msra.mxu0 0.0
    %173 = vmatprep.subr.mxu0 0.0
    %174 = vmatpush1.xpose.msra.mxu0 0.0
    %175 = vmatprep.subr.mxu0 0.0
    %176 = vmatpush1.xpose.msra.mxu0 0.0
    %177 = vmatprep.subr.mxu0 0.0
    %178 = vmatpush1.xpose.msra.mxu0 0.0
    %179 = vmatprep.subr.mxu0 0.0
    %180 = vmatpush1.xpose.msra.mxu0 0.0
    %181 = vmatprep.subr.mxu0 0.0
    %182 = vmatpush1.xpose.msra.mxu0 0.0
    %183 = vmatprep.subr.mxu0 0.0
    %184 = vmatpush1.xpose.msra.mxu0 0.0
    %185 = vmatprep.subr.mxu0 0.0
    %186 = vmatpush1.xpose.msra.mxu0 0.0
    %187 = vmatprep.subr.mxu0 0.0
    %188 = vmatpush1.xpose.msra.mxu0 0.0
    %189 = vmatprep.subr.mxu0 0.0
    %190 = vmatpush1.xpose.msra.mxu0 0.0
    %191 = vmatprep.subr.mxu0 0.0
    %192 = vmatpush1.xpose.msra.mxu0 0.0
    %193 = vmatprep.subr.mxu0 0.0
    %194 = vmatpush1.xpose.msra.mxu0 0.0
    %195 = vmatprep.subr.mxu0 0.0
    %196 = vmatpush1.xpose.msra.mxu0 0.0
    %197 = vmatprep.mubr.f32.mxu0 0.0
    %198 = vmatmul.mubr.f32.gmra.mrb[0].mxu0 %v125
    %v199 = vpop.f32.mrb[0].mxu0
    %v200 = vadd.f32 0.0, %v199
    %v201 = vpop.f32.mrb[0].mxu0
    %202 = vdwg.mxu0
    %v203 = vlaneseq
    %v204 = vshrl.u32 %v203, 7
    %v205 = vsub.s32 0, %v204
    %v206 = vrot.slane %v200, %v205
    %v207 = vadd.f32 %v121, %v206
    %v208 = vmul.f32 %v115, 2.0
    %v209 = vsub.f32 %v207, %v208
    %v210 = vlaneseq
    %v211 = vand.u32 %v210, 127
    %212 = vset.pattern.permute.xlu0 0
    %213 = vperm.xlu0 %212, %v36
    %v214 = vpop.permute.xlu0 %213
    %vm215 = vcmp.eq.s32.totalorder %v214, %v211
    %216 = vset.pattern.permute.xlu0 0
    %217 = vperm.xlu0 %216, %v37
    %v218 = vpop.permute.xlu0 %217
    %vm219 = vcmp.eq.s32.totalorder %v218, %v211
    %v220 = vsel %vm219, 1, 0
    %vm221 = vcmask 80896
    %v222 = vsel %vm221, %v220, 2147483648
    %v223 = vrot.slane %v222, 4
    %vm224 = vcmp.gt.s32.totalorder %v222, %v223
    %v225 = vsel %vm224, %v222, %v223
    %v226 = vrot.slane %v225, 2
    %vm227 = vcmp.gt.s32.totalorder %v225, %v226
    %v228 = vsel %vm227, %v225, %v226
    %v229 = vrot.slane %v228, 1
    %vm230 = vcmp.gt.s32.totalorder %v228, %v229
    %v231 = vsel %vm230, %v228, %v229
    %vm232 = vcmp.gt.s32.totalorder %v231, 0
    %v233 = vsel %vm215, %v209, -inf
    %v234 = vsel %vm221, %v233, -inf
    %235 = vmax.xlane.f32.xlu0 %v234
    %v236 = vpop.xlane.xlu0 %235
    %vm237 = vmxor %vm215, 1
    %v238 = vsel %vm232, 1, 0
    %vm239 = vcmp.eq.s32.totalorder %v238, 1
    %vm240 = vmand %vm237, %vm239
    %v241 = vsel %vm240, %v209, inf
    %v242 = vsel %vm221, %v241, inf
    %243 = vmin.xlane.f32.xlu0 %v242
    %v244 = vpop.xlane.xlu0 %243
    %v245 = vmax.f32 %v236, 1e-12
    %v246 = vrsqrt.pop %v245
    %v247 = vmul.f32 %v245, %v246
    %vm248 = vcmp.eq.f32.partialorder %v245, inf
    %v249 = vsel %vm248, %v245, %v247
    %vm250 = vcmp.eq.f32.partialorder %v245, 0.0
    %v251 = vand.u32 %v245, 2147483648
    %v252 = vsel %vm250, %v251, %v249
    %v253 = vmax.f32 %v244, 1e-12
    %v254 = vrsqrt.pop %v253
    %v255 = vmul.f32 %v253, %v254
    %vm256 = vcmp.eq.f32.partialorder %v253, inf
    %v257 = vsel %vm256, %v253, %v255
    %vm258 = vcmp.eq.f32.partialorder %v253, 0.0
    %v259 = vand.u32 %v253, 2147483648
    %v260 = vsel %vm258, %v259, %v257
    %s261 = smul.u32 0, 8
    %v262 = vlaneseq
    %v263 = vshrl.u32 %v262, 7
    %v264 = vstv %s261
    %v265 = vadd.s32 %v264, %v263
    %vm266 = vcmp.lt.s32.totalorder %v265, 8
    %v267 = vsub.f32 %v252, %v260
    %v268 = vadd.f32 %v267, 0.0
    %v269 = vmax.f32 %v268, 0.0
    %v270 = vsub.f32 %v260, %v252
    %v271 = vsel %vm266, %v269, 0.0
    %vm272 = vcmask 7168
    %v273 = vsel %vm272, %v271, 0.0
    %274 = vadd.xlane.f32.xlu0 %v273
    %v275 = vpop.xlane.xlu0 %274
    %v276 = vrot.slane %v275, 4
    %v277 = vadd.f32 %v275, %v276
    %v278 = vrot.slane %v277, 2
    %v279 = vadd.f32 %v277, %v278
    %v280 = vrot.slane %v279, 1
    %v281 = vadd.f32 %v279, %v280
    %s282 = vtos %v281
    %s283 = scalar_lea.smem [#allocation5], 0
    %284 = sst [smem:[%s283]] %s282
    %v285 = vsel %vm266, %v270, 0.0
    %v286 = vsel %vm272, %v285, 0.0
    %287 = vadd.xlane.f32.xlu0 %v286
    %v288 = vpop.xlane.xlu0 %287
    %v289 = vrot.slane %v288, 4
    %v290 = vadd.f32 %v288, %v289
    %v291 = vrot.slane %v290, 2
    %v292 = vadd.f32 %v290, %v291
    %v293 = vrot.slane %v292, 1
    %v294 = vadd.f32 %v292, %v293
    %s295 = vtos %v294
    %s296 = scalar_lea.smem [#allocation6], 0
    %297 = sst [smem:[%s296]] %s295
    // Predicated region
    $region22: #{tpu_custom_call.1} parent=1 // pred_check
      _
    $region23: #{tpu_custom_call.1} parent=1 // pred_check_branch
      %299 = sbr.rel (0) target = $region25
    $region24: #{tpu_custom_call.1} parent=1 // pred_region
      %s301 = ssub.s32 16, 16
      %302 = vsyncadd [#allocation4], %s301
      %305 = dma.smem_to_hbm [#allocation5], 16, %s4, [#allocation4]
    $region25: #{tpu_custom_call.1} parent=1 // pred_fallthru
      _
    // Predicated region
    $region26: #{tpu_custom_call.1} parent=1 // pred_check
      _
    $region27: #{tpu_custom_call.1} parent=1 // pred_check_branch
      %307 = sbr.rel (0) target = $region29
    $region28: #{tpu_custom_call.1} parent=1 // pred_region
      %s309 = ssub.s32 16, 16
      %310 = vsyncadd [#allocation7], %s309
      %313 = dma.smem_to_hbm [#allocation6], 16, %s5, [#allocation7]
    $region29: #{tpu_custom_call.1} parent=1 // pred_fallthru
      _
    // Predicated region
    $region30: #{tpu_custom_call.1} parent=1 // pred_check
      _
    $region31: #{tpu_custom_call.1} parent=1 // pred_check_branch
      %315 = sbr.rel (0) target = $region33
    $region32: #{tpu_custom_call.1} parent=1 // pred_region
      %316 = dma.done [#allocation4], 16
    $region33: #{tpu_custom_call.1} parent=1 // pred_fallthru
      _
    // Predicated region
    $region34: #{tpu_custom_call.1} parent=1 // pred_check
      _
    $region35: #{tpu_custom_call.1} parent=1 // pred_check_branch
      %318 = sbr.rel (0) target = $region37
    $region36: #{tpu_custom_call.1} parent=1 // pred_region
      %319 = dma.done [#allocation7], 16
    $region37: #{tpu_custom_call.1} parent=1 // pred_fallthru
      _
    %320 = sfence
    %321 = vsyncpa [#allocation3], 1
    %322 = vsyncpa [#allocation4], 1
    %323 = vsyncpa [#allocation7], 1

</llo_original>
